<compile_context>
chip_gen: v5e
topology: v5e:2x2
jax: 0.10.0
libtpu: 0.0.40
codegen_flags: <defaults>
</compile_context>

<pallas_src>
import jax
import jax.numpy as jnp
from jax.experimental import pallas as pl
from jax.experimental.pallas import tpu as pltpu


def _sge_kernel(x_ref, w_ref, b_ref, o_ref):
    """One (T, cpg, hw) block; every statistic is per-(batch, group) row."""
    x = x_ref[...]                              # (T, cpg, hw), input dtype
    cpg = x.shape[1]
    hw = x.shape[2]
    xf = x.astype(jnp.float32)                  # identity when the input is f32

    # ChannelPool: max over channels + mean over channels, kept sublane-dense
    # at (T, hw) f32 (no 8-sublane-padded keepdims temps).
    t = jnp.max(xf, axis=1) + jnp.sum(xf, axis=1) * (1.0 / cpg)

    # Spatial statistics over the true h*w extent: the block's last dim is the
    # full (unpadded) hw, so logical-shape reductions need no explicit mask.
    mean = jnp.sum(t, axis=1, keepdims=True) * (1.0 / hw)
    tc = t - mean
    # Unbiased variance (torch.std default, N-1); clamp the divisor for the
    # degenerate hw == 1 case (torch would give NaN there).
    var = jnp.sum(tc * tc, axis=1, keepdims=True) * (1.0 / max(hw - 1, 1))
    std = jnp.sqrt(var) + 1e-5                  # eps on std: torch.std() + 1e-5

    # Reciprocal on the EUP + one Newton step to restore f32 accuracy, then a
    # broadcast multiply instead of a per-element divide.
    inv = pl.reciprocal(std, approx=True)
    inv = inv * (2.0 - std * inv)
    tn = tc * inv                               # (T, hw) f32

    if len(w_ref.shape) == 3:
        # Small-tile fallback param layout (T, 1, 1): keep only the affine +
        # sigmoid in 3-D so the param vector needs no relayout.
        gate = jax.nn.sigmoid(tn[:, None, :] * w_ref[...] + b_ref[...])   # (T,1,hw)
        o_ref[...] = (x * gate.astype(x.dtype)).astype(o_ref.dtype)
    else:
        gate = jax.nn.sigmoid(tn * w_ref[...] + b_ref[...])               # (T, hw)
        o_ref[...] = (x * gate.astype(x.dtype)[:, None, :]).astype(o_ref.dtype)


def _num_tensorcores():
    """Best-effort TensorCores per chip (2 on v7x, 1 on v5e/v6e)."""
    try:
        info = pltpu.get_tpu_info()
        for name in ("num_cores", "core_count", "num_tensorcores", "num_tensor_cores"):
            v = getattr(info, name, None)
            if isinstance(v, int) and v > 0:
                return int(v)
    except Exception:
        pass
    try:
        kind = jax.devices()[0].device_kind.lower()
        if "v7" in kind or "7x" in kind:
            return 2
    except Exception:
        pass
    return 1


def _vmem_capacity_bytes():
    """Per-core VMEM capacity; conservative v7x default (64 MiB) on failure."""
    cap = 64 * 1024 * 1024
    try:
        cap = int(getattr(pltpu.get_tpu_info(), "vmem_capacity_bytes", cap))
    except Exception:
        pass
    return cap


def spatial_group_enhance(x, weight, bias, groups):
    """x: (b, c, h, w) NCHW; weight/bias: (1, groups, 1, 1). Returns (b, c, h, w)."""
    b, c, h, w = x.shape
    assert c % groups == 0, "channels must be divisible by groups"
    cpg = c // groups
    hw = h * w
    n_bg = b * groups

    # Metadata-only reshape: no HBM copy, no padding.
    xg = x.reshape(n_bg, cpg, hw)

    # Per-(batch, group) affine params, flat index i = bi*groups + g (tiny).
    w_flat = jnp.tile(weight.reshape(groups).astype(jnp.float32), b)
    b_flat = jnp.tile(bias.reshape(groups).astype(jnp.float32), b)

    # ---- Honest per-(b,g)-slice VMEM accounting ---------------------------
    itemsize = jnp.dtype(x.dtype).itemsize
    sub = max(8, 32 // itemsize)                      # sublane packing for dtype
    cpg_pad = pl.cdiv(cpg, sub) * sub
    hw_pad = pl.cdiv(hw, 128) * 128                   # lane padding inside VMEM

    block_bytes = cpg_pad * hw_pad * itemsize         # one slice of the in/out block
    slice_bytes = 4 * block_bytes                     # in + out, double-buffered
    if itemsize != 4:
        slice_bytes += (pl.cdiv(cpg, 8) * 8) * hw_pad * 4   # f32 upcast for the stats
    slice_bytes += 16 * hw_pad * 4                    # live (T,hw)/(T,1,hw) f32 temps
    slice_bytes += 4 * 8 * 128 * 4                    # affine param blocks (worst case)

    vmem_cap = _vmem_capacity_bytes()
    vmem_limit = min((vmem_cap * 3) // 4, 96 * 1024 * 1024)
    budget = vmem_limit - (2 << 20)                   # Mosaic scratch / semaphore headroom
    if slice_bytes > budget:
        # TODO(synk): add a second grid axis over h*w with a two-pass
        # sum / sum-of-squares scheme for feature maps too large for VMEM
        # (needed first on v7x's 64 MiB per-TC VMEM).
        raise NotImplementedError(
            f"single (batch, group) slice needs {slice_bytes} B of VMEM "
            f"(> budget {budget} B); h*w={hw} too large for the single-pass kernel")

    max_tile_budget = max(1, budget // slice_bytes)
    max_tile_buf = max(1, (8 * 1024 * 1024) // block_bytes)   # mem-bound saturation cap
    tile_bg = min(n_bg, max_tile_budget, max_tile_buf)

    # Keep partial tiles 8-row aligned so the 2-D affine-param BlockSpec stays
    # legal; sub-8 tiles (huge h*w) use the 3-D param fallback below.
    if tile_bg < n_bg and tile_bg >= 8:
        tile_bg = (tile_bg // 8) * 8

    # v7x megacore: balance the "parallel" axis to an even number of steps so
    # neither TensorCore idles on a tail step.  Single-TC parts (v5e/v6e) keep
    # the largest tile (no forced split, no extra per-step overhead).
    if _num_tensorcores() >= 2 and n_bg >= 2 and pl.cdiv(n_bg, tile_bg) % 2 == 1:
        s0 = pl.cdiv(n_bg, tile_bg)
        for s in range(s0 + 1, s0 + 17, 2):           # even step-count targets
            cand = pl.cdiv(n_bg, s)
            if cand >= 8:
                cand = pl.cdiv(cand, 8) * 8           # prefer the 2-D param layout
            if cand <= tile_bg and pl.cdiv(n_bg, cand) % 2 == 0:
                tile_bg = cand
                break

    steps = pl.cdiv(n_bg, tile_bg)

    params_3d = not (tile_bg == n_bg or tile_bg % 8 == 0)
    if params_3d:
        # (tile,1,1) blocks are always legal; their padding waste is bounded
        # because this path only occurs for small tiles.
        w_arr = w_flat.reshape(n_bg, 1, 1)
        b_arr = b_flat.reshape(n_bg, 1, 1)
        p_spec = pl.BlockSpec((tile_bg, 1, 1), lambda i: (i, 0, 0))
    else:
        # (tile,1) blocks: lane padding only, no per-row (8,128) waste.
        w_arr = w_flat.reshape(n_bg, 1)
        b_arr = b_flat.reshape(n_bg, 1)
        p_spec = pl.BlockSpec((tile_bg, 1), lambda i: (i, 0))

    out = pl.pallas_call(
        _sge_kernel,
        out_shape=jax.ShapeDtypeStruct((n_bg, cpg, hw), x.dtype),
        grid=(steps,),
        in_specs=[
            # Last two block dims == full array dims -> (8,128) rule satisfied
            # and no padded-lane DMA inflation, even when hw % 128 != 0.
            pl.BlockSpec((tile_bg, cpg, hw), lambda i: (i, 0, 0)),
            p_spec,
            p_spec,
        ],
        out_specs=pl.BlockSpec((tile_bg, cpg, hw), lambda i: (i, 0, 0)),
        compiler_params=pltpu.CompilerParams(
            dimension_semantics=("parallel",),
            vmem_limit_bytes=int(vmem_limit)),
    )(xg, w_arr, b_arr)

    # Metadata-only reshape back to NCHW (no slicing: the kernel output already
    # has the exact logical shape).
    return out.reshape(b, c, h, w)


def _reference(x, weight, bias, groups):
    """Pure-JAX port of the PyTorch forward (f32 compute), for checking."""
    b, c, h, w = x.shape
    xg = x.reshape(b * groups, c // groups, h, w).astype(jnp.float32)
    xn = jnp.max(xg, axis=1, keepdims=True) + jnp.mean(xg, axis=1, keepdims=True)
    t = xn.reshape(b * groups, -1)
    t = t - jnp.mean(t, axis=1, keepdims=True)
    std = jnp.std(t, axis=1, keepdims=True, ddof=1) + 1e-5
    t = t / std
    t = t.reshape(b, groups, h, w)
    t = t * weight + bias
    t = t.reshape(b * groups, 1, h, w)
    xg = xg * jax.nn.sigmoid(t)
    return xg.reshape(b, c, h, w).astype(x.dtype)


if __name__ == "__main__":
    def _check(B, C, H, W, GROUPS, dtype=jnp.float32, atol=1e-5, rtol=1e-4):
        key = jax.random.PRNGKey(0)
        kx, kw, kb = jax.random.split(key, 3)
        x = jax.random.normal(kx, (B, C, H, W), dtype=jnp.float32).astype(dtype)
        # Module init is weight=zeros, bias=ones; perturb so the affine path
        # is actually exercised.
        weight = 0.1 * jax.random.normal(kw, (1, GROUPS, 1, 1), dtype=jnp.float32)
        bias = 1.0 + 0.1 * jax.random.normal(kb, (1, GROUPS, 1, 1), dtype=jnp.float32)

        out = jax.block_until_ready(spatial_group_enhance(x, weight, bias, GROUPS))
        ref = _reference(x, weight, bias, GROUPS)
        assert out.shape == (B, C, H, W)
        assert out.dtype == x.dtype
        a = out.astype(jnp.float32)
        r = ref.astype(jnp.float32)
        assert jnp.allclose(a, r, atol=atol, rtol=rtol), float(jnp.max(jnp.abs(a - r)))

    _check(2, 16, 16, 16, 4)                       # lane-aligned spatial (h*w = 256)
    _check(2, 8, 7, 7, 2)                          # h*w = 49, unpadded full-dim block
    _check(2, 8, 7, 7, 2, dtype=jnp.bfloat16,      # bf16 gate-multiply path (v6e/v7x)
           atol=5e-2, rtol=5e-2)
    print("KERNEL_OK")
</pallas_src>

<mosaic_0001>
module attributes {stable_mosaic.version = 11 : i64} {
  func.func @_sge_kernel(%arg0: i32, %arg1: memref<8x4x256xf32, #tpu.memory_space<vmem>>, %arg2: memref<8x1xf32, #tpu.memory_space<vmem>>, %arg3: memref<8x1xf32, #tpu.memory_space<vmem>>, %arg4: memref<8x4x256xf32, #tpu.memory_space<vmem>>) attributes {dimension_semantics = [#tpu.dimension_semantics<parallel>], iteration_bounds = array<i64: 1>, scalar_prefetch = 0 : i64, scratch_operands = 0 : i64, tpu.core_type = #tpu.core_type<tc>, window_params = [{transform_indices = @transform_0, window_bounds = array<i64: 8, 4, 256>}, {transform_indices = @transform_1, window_bounds = array<i64: 8, 1>}, {transform_indices = @transform_2, window_bounds = array<i64: 8, 1>}, {transform_indices = @transform_3, window_bounds = array<i64: 8, 4, 256>}]} {
    %c0 = arith.constant 0 : index
    %c0_0 = arith.constant 0 : index
    %c0_1 = arith.constant 0 : index
    %0 = vector.load %arg1[%c0, %c0_0, %c0_1] : memref<8x4x256xf32, #tpu.memory_space<vmem>>, vector<8x4x256xf32>
    %cst = arith.constant dense<0xFF800000> : vector<8x256xf32>
    %1 = vector.multi_reduction <maximumf>, %0, %cst [1] : vector<8x4x256xf32> to vector<8x256xf32>
    %cst_2 = arith.constant dense<0.000000e+00> : vector<8x256xf32>
    %2 = vector.multi_reduction <add>, %0, %cst_2 [1] : vector<8x4x256xf32> to vector<8x256xf32>
    %cst_3 = arith.constant 2.500000e-01 : f32
    %3 = vector.broadcast %cst_3 : f32 to vector<8x256xf32>
    %4 = arith.mulf %2, %3 : vector<8x256xf32>
    %5 = arith.addf %1, %4 : vector<8x256xf32>
    %cst_4 = arith.constant dense<0.000000e+00> : vector<8xf32>
    %6 = vector.multi_reduction <add>, %5, %cst_4 [1] : vector<8x256xf32> to vector<8xf32>
    %7 = vector.shape_cast %6 : vector<8xf32> to vector<8x1xf32>
    %cst_5 = arith.constant 3.906250e-03 : f32
    %8 = vector.broadcast %cst_5 : f32 to vector<8x1xf32>
    %9 = arith.mulf %7, %8 : vector<8x1xf32>
    %10 = vector.broadcast %9 : vector<8x1xf32> to vector<8x256xf32>
    %11 = arith.subf %5, %10 : vector<8x256xf32>
    %12 = arith.mulf %11, %11 : vector<8x256xf32>
    %cst_6 = arith.constant dense<0.000000e+00> : vector<8xf32>
    %13 = vector.multi_reduction <add>, %12, %cst_6 [1] : vector<8x256xf32> to vector<8xf32>
    %14 = vector.shape_cast %13 : vector<8xf32> to vector<8x1xf32>
    %cst_7 = arith.constant 0.00392156886 : f32
    %15 = vector.broadcast %cst_7 : f32 to vector<8x1xf32>
    %16 = arith.mulf %14, %15 : vector<8x1xf32>
    %17 = math.sqrt %16 : vector<8x1xf32>
    %cst_8 = arith.constant 9.99999974E-6 : f32
    %18 = vector.broadcast %cst_8 : f32 to vector<8x1xf32>
    %19 = arith.addf %17, %18 : vector<8x1xf32>
    %20 = tpu.reciprocal %19 {approx = true} : vector<8x1xf32> -> vector<8x1xf32>
    %21 = arith.mulf %19, %20 : vector<8x1xf32>
    %cst_9 = arith.constant 2.000000e+00 : f32
    %22 = vector.broadcast %cst_9 : f32 to vector<8x1xf32>
    %23 = arith.subf %22, %21 : vector<8x1xf32>
    %24 = arith.mulf %20, %23 : vector<8x1xf32>
    %25 = vector.broadcast %24 : vector<8x1xf32> to vector<8x256xf32>
    %26 = arith.mulf %11, %25 : vector<8x256xf32>
    %c0_10 = arith.constant 0 : index
    %c0_11 = arith.constant 0 : index
    %27 = vector.load %arg2[%c0_10, %c0_11] : memref<8x1xf32, #tpu.memory_space<vmem>>, vector<8x1xf32>
    %28 = vector.broadcast %27 : vector<8x1xf32> to vector<8x256xf32>
    %29 = arith.mulf %26, %28 : vector<8x256xf32>
    %c0_12 = arith.constant 0 : index
    %c0_13 = arith.constant 0 : index
    %30 = vector.load %arg3[%c0_12, %c0_13] : memref<8x1xf32, #tpu.memory_space<vmem>>, vector<8x1xf32>
    %31 = vector.broadcast %30 : vector<8x1xf32> to vector<8x256xf32>
    %32 = arith.addf %29, %31 : vector<8x256xf32>
    %33 = arith.negf %32 : vector<8x256xf32>
    %34 = math.exp %33 : vector<8x256xf32>
    %cst_14 = arith.constant 1.000000e+00 : f32
    %35 = vector.broadcast %cst_14 : f32 to vector<8x256xf32>
    %36 = arith.addf %35, %34 : vector<8x256xf32>
    %37 = arith.divf %35, %36 : vector<8x256xf32>
    %38 = vector.shape_cast %37 : vector<8x256xf32> to vector<8x1x256xf32>
    %39 = vector.broadcast %38 : vector<8x1x256xf32> to vector<8x4x256xf32>
    %40 = arith.mulf %0, %39 : vector<8x4x256xf32>
    %c0_15 = arith.constant 0 : index
    %c0_16 = arith.constant 0 : index
    %c0_17 = arith.constant 0 : index
    %41 = vector.load %arg4[%c0_15, %c0_16, %c0_17] : memref<8x4x256xf32, #tpu.memory_space<vmem>>, vector<8x4x256xf32>
    tpu.vector_store %arg4[%c0_15, %c0_16, %c0_17], %40 {strides = array<i32>} : memref<8x4x256xf32, #tpu.memory_space<vmem>>, vector<8x4x256xf32>,
    return
  }
  func.func @transform_0(%arg0: i32) -> (i32, i32, i32) {
    %c0_i32 = arith.constant 0 : i32
    %c0_i32_0 = arith.constant 0 : i32
    %c0_i32_1 = arith.constant 0 : i32
    return %arg0, %c0_i32, %c0_i32_0 : i32, i32, i32
  }
  func.func @transform_1(%arg0: i32) -> (i32, i32) {
    %c0_i32 = arith.constant 0 : i32
    %c0_i32_0 = arith.constant 0 : i32
    return %arg0, %c0_i32 : i32, i32
  }
  func.func @transform_2(%arg0: i32) -> (i32, i32) {
    %c0_i32 = arith.constant 0 : i32
    %c0_i32_0 = arith.constant 0 : i32
    return %arg0, %c0_i32 : i32, i32
  }
  func.func @transform_3(%arg0: i32) -> (i32, i32, i32) {
    %c0_i32 = arith.constant 0 : i32
    %c0_i32_0 = arith.constant 0 : i32
    %c0_i32_1 = arith.constant 0 : i32
    return %arg0, %c0_i32, %c0_i32_0 : i32, i32, i32
  }
}

</mosaic_0001>

<llo_original>
// kernel: tpu_custom_call.1
$region0: #{tpu_custom_call.1}
  #allocation0 [shape = 'u32[]', space=smem, size = 0x4, offset = 0x4, fixed_abs, tag = 'smem constant byte address 0x4 - core index']
  #allocation1 [shape = 'u32[72,128]{1,0:T(1,128)}', space=vmem, size = 0x9000, scoped, tag = 'internal scratch']
  %s0 = inlined_call_operand.hbm [shape: f32[8,4,256], index: 0, kind: input, shape index: {}]
  %s1 = inlined_call_operand.vmem [shape: f32[8,1], index: 1, kind: input, shape index: {}]
  %s2 = inlined_call_operand.vmem [shape: f32[8,1], index: 2, kind: input, shape index: {}]
  %s3 = inlined_call_operand.hbm [shape: f32[8,4,256], index: 3, kind: output, shape index: {}]
  %s4 = sld [smem:[#allocation0]]
  $region26: #{tpu_custom_call.1} parent=0
    _
  %s6 = ssub.s32 1, %s4
  %s7 = scalar_select 0, %s6, %s4
  $region1: #{tpu_custom_call.1} parent=0
    #allocation2 [shape = 'u8[32768]{0}', space=vmem, size = 0x8000, scoped, tag = 'input window, operand 0, single buffered']
    #allocation3 [shape = 's32[1]{0}', space=sflag, size = 0x4, scoped, tag = 'scoped memory for tpu_custom_call.1']
    #allocation4 [shape = 's32[1]{0}', space=sflag, size = 0x4, scoped, tag = 'scoped memory for tpu_custom_call.1']
    #allocation5 [shape = 'u8[32768]{0}', space=vmem, size = 0x8000, scoped, tag = 'output window, operand 0, single buffered']
    %8 = vsyncpa [#allocation3], 0
    %9 = vsyncpa [#allocation4], 0
    // Predicated region
    $region2: #{tpu_custom_call.1} parent=1 // pred_check
      _
    $region3: #{tpu_custom_call.1} parent=1 // pred_check_branch
      %11 = sbr.rel (0) target = $region5
    $region4: #{tpu_custom_call.1} parent=1 // pred_region
      %13 = vsyncadd [#allocation3], 0
      %s14 = sshll.u32 %s0, 4
      %s15 = int_to_ptr.hbm [resolvable:$true] %s14
      %s16 = sshll.u32 [#allocation2], 4
      %s17 = int_to_ptr.vmem [resolvable:$true] %s16
      %22 = dma.hbm_to_vmem [thread:$0]  %s15, 1024, %s17, [#allocation3], 128, 128, 8
    $region5: #{tpu_custom_call.1} parent=1 // pred_fallthru
      _
    // Predicated region
    $region6: #{tpu_custom_call.1} parent=1 // pred_check
      _
    $region7: #{tpu_custom_call.1} parent=1 // pred_check_branch
      %24 = sbr.rel (0) target = $region9
    $region8: #{tpu_custom_call.1} parent=1 // pred_region
      _
    $region9: #{tpu_custom_call.1} parent=1 // pred_fallthru
      _
    // Predicated region
    $region10: #{tpu_custom_call.1} parent=1 // pred_check
      _
    $region11: #{tpu_custom_call.1} parent=1 // pred_check_branch
      %26 = sbr.rel (0) target = $region13
    $region12: #{tpu_custom_call.1} parent=1 // pred_region
      _
    $region13: #{tpu_custom_call.1} parent=1 // pred_fallthru
      _
    // Predicated region
    $region14: #{tpu_custom_call.1} parent=1 // pred_check
      _
    $region15: #{tpu_custom_call.1} parent=1 // pred_check_branch
      %28 = sbr.rel (0) target = $region17
    $region16: #{tpu_custom_call.1} parent=1 // pred_region
      %30 = dma.done [#allocation3], 1024
    $region17: #{tpu_custom_call.1} parent=1 // pred_fallthru
      _
    %v31 = vld [vmem:[#allocation2] sm:$0xff]
    %v32 = vld [vmem:[#allocation2 + $0x8] sm:$0xff]
    %v33 = vld [vmem:[#allocation2 + $0x10] sm:$0xff]
    %v34 = vld [vmem:[#allocation2 + $0x18] sm:$0xff]
    %v35 = vld [vmem:[#allocation2 + $0x20] sm:$0xff]
    %v36 = vld [vmem:[#allocation2 + $0x28] sm:$0xff]
    %v37 = vld [vmem:[#allocation2 + $0x30] sm:$0xff]
    %v38 = vld [vmem:[#allocation2 + $0x38] sm:$0xff]
    %47 = vst [vmem:[#allocation1] ss:$2 sm:$0xff] %v31
    %v48 = vld.sshfl [vmem:[#allocation1] sm:$0xff pattern:$0x75316420]
    %v49 = vld.sshfl [vmem:[#allocation1 + $0x8] sm:$0xff pattern:$0x75316420]
    %s50 = scalar_lea.vmem [#allocation1], 16
    %51 = vst [vmem:[%s50] ss:$2 sm:$0xff] %v32
    %v52 = vld.sshfl [vmem:[#allocation1 + $0x10] sm:$0xff pattern:$0x75316420]
    %v53 = vld.sshfl [vmem:[#allocation1 + $0x18] sm:$0xff pattern:$0x75316420]
    %s54 = scalar_lea.vmem [#allocation1], 32
    %55 = vst [vmem:[%s54] ss:$2 sm:$0xff] %v33
    %v56 = vld.sshfl [vmem:[#allocation1 + $0x20] sm:$0xff pattern:$0x75316420]
    %v57 = vld.sshfl [vmem:[#allocation1 + $0x28] sm:$0xff pattern:$0x75316420]
    %s58 = scalar_lea.vmem [#allocation1], 48
    %59 = vst [vmem:[%s58] ss:$2 sm:$0xff] %v34
    %v60 = vld.sshfl [vmem:[#allocation1 + $0x30] sm:$0xff pattern:$0x75316420]
    %v61 = vld.sshfl [vmem:[#allocation1 + $0x38] sm:$0xff pattern:$0x75316420]
    %62 = vst [vmem:[#allocation1] ss:$2 sm:$0xff] %v35
    %v63 = vld.sshfl [vmem:[#allocation1] sm:$0xff pattern:$0x75316420]
    %v64 = vld.sshfl [vmem:[#allocation1 + $0x8] sm:$0xff pattern:$0x75316420]
    %65 = vst [vmem:[%s50] ss:$2 sm:$0xff] %v36
    %v66 = vld.sshfl [vmem:[#allocation1 + $0x10] sm:$0xff pattern:$0x75316420]
    %v67 = vld.sshfl [vmem:[#allocation1 + $0x18] sm:$0xff pattern:$0x75316420]
    %68 = vst [vmem:[%s54] ss:$2 sm:$0xff] %v37
    %v69 = vld.sshfl [vmem:[#allocation1 + $0x20] sm:$0xff pattern:$0x75316420]
    %v70 = vld.sshfl [vmem:[#allocation1 + $0x28] sm:$0xff pattern:$0x75316420]
    %71 = vst [vmem:[%s58] ss:$2 sm:$0xff] %v38
    %v72 = vld.sshfl [vmem:[#allocation1 + $0x30] sm:$0xff pattern:$0x75316420]
    %v73 = vld.sshfl [vmem:[#allocation1 + $0x38] sm:$0xff pattern:$0x75316420]
    %vm90 = vcmask 1043456
    %v91 = vsel %vm90, %v48, -inf
    %v92 = vrot.slane %v91, 4
    %v93 = vmax.f32 %v91, %v92
    %v94 = vrot.slane %v93, 2
    %v95 = vmax.f32 %v93, %v94
    %v96 = vrot.slane %v95, 1
    %v97 = vmax.f32 %v95, %v96
    %v98 = vsel %vm90, %v49, -inf
    %v99 = vrot.slane %v98, 4
    %v100 = vmax.f32 %v98, %v99
    %v101 = vrot.slane %v100, 2
    %v102 = vmax.f32 %v100, %v101
    %v103 = vrot.slane %v102, 1
    %v104 = vmax.f32 %v102, %v103
    %v105 = vsel %vm90, %v52, -inf
    %v106 = vrot.slane %v105, 4
    %v107 = vmax.f32 %v105, %v106
    %v108 = vrot.slane %v107, 2
    %v109 = vmax.f32 %v107, %v108
    %v110 = vrot.slane %v109, 1
    %v111 = vmax.f32 %v109, %v110
    %v112 = vsel %vm90, %v53, -inf
    %v113 = vrot.slane %v112, 4
    %v114 = vmax.f32 %v112, %v113
    %v115 = vrot.slane %v114, 2
    %v116 = vmax.f32 %v114, %v115
    %v117 = vrot.slane %v116, 1
    %v118 = vmax.f32 %v116, %v117
    %v119 = vsel %vm90, %v56, -inf
    %v120 = vrot.slane %v119, 4
    %v121 = vmax.f32 %v119, %v120
    %v122 = vrot.slane %v121, 2
    %v123 = vmax.f32 %v121, %v122
    %v124 = vrot.slane %v123, 1
    %v125 = vmax.f32 %v123, %v124
    %v126 = vsel %vm90, %v57, -inf
    %v127 = vrot.slane %v126, 4
    %v128 = vmax.f32 %v126, %v127
    %v129 = vrot.slane %v128, 2
    %v130 = vmax.f32 %v128, %v129
    %v131 = vrot.slane %v130, 1
    %v132 = vmax.f32 %v130, %v131
    %v133 = vsel %vm90, %v60, -inf
    %v134 = vrot.slane %v133, 4
    %v135 = vmax.f32 %v133, %v134
    %v136 = vrot.slane %v135, 2
    %v137 = vmax.f32 %v135, %v136
    %v138 = vrot.slane %v137, 1
    %v139 = vmax.f32 %v137, %v138
    %v140 = vsel %vm90, %v61, -inf
    %v141 = vrot.slane %v140, 4
    %v142 = vmax.f32 %v140, %v141
    %v143 = vrot.slane %v142, 2
    %v144 = vmax.f32 %v142, %v143
    %v145 = vrot.slane %v144, 1
    %v146 = vmax.f32 %v144, %v145
    %v147 = vsel %vm90, %v63, -inf
    %v148 = vrot.slane %v147, 4
    %v149 = vmax.f32 %v147, %v148
    %v150 = vrot.slane %v149, 2
    %v151 = vmax.f32 %v149, %v150
    %v152 = vrot.slane %v151, 1
    %v153 = vmax.f32 %v151, %v152
    %v154 = vsel %vm90, %v64, -inf
    %v155 = vrot.slane %v154, 4
    %v156 = vmax.f32 %v154, %v155
    %v157 = vrot.slane %v156, 2
    %v158 = vmax.f32 %v156, %v157
    %v159 = vrot.slane %v158, 1
    %v160 = vmax.f32 %v158, %v159
    %v161 = vsel %vm90, %v66, -inf
    %v162 = vrot.slane %v161, 4
    %v163 = vmax.f32 %v161, %v162
    %v164 = vrot.slane %v163, 2
    %v165 = vmax.f32 %v163, %v164
    %v166 = vrot.slane %v165, 1
    %v167 = vmax.f32 %v165, %v166
    %v168 = vsel %vm90, %v67, -inf
    %v169 = vrot.slane %v168, 4
    %v170 = vmax.f32 %v168, %v169
    %v171 = vrot.slane %v170, 2
    %v172 = vmax.f32 %v170, %v171
    %v173 = vrot.slane %v172, 1
    %v174 = vmax.f32 %v172, %v173
    %v175 = vsel %vm90, %v69, -inf
    %v176 = vrot.slane %v175, 4
    %v177 = vmax.f32 %v175, %v176
    %v178 = vrot.slane %v177, 2
    %v179 = vmax.f32 %v177, %v178
    %v180 = vrot.slane %v179, 1
    %v181 = vmax.f32 %v179, %v180
    %v182 = vsel %vm90, %v70, -inf
    %v183 = vrot.slane %v182, 4
    %v184 = vmax.f32 %v182, %v183
    %v185 = vrot.slane %v184, 2
    %v186 = vmax.f32 %v184, %v185
    %v187 = vrot.slane %v186, 1
    %v188 = vmax.f32 %v186, %v187
    %v189 = vsel %vm90, %v72, -inf
    %v190 = vrot.slane %v189, 4
    %v191 = vmax.f32 %v189, %v190
    %v192 = vrot.slane %v191, 2
    %v193 = vmax.f32 %v191, %v192
    %v194 = vrot.slane %v193, 1
    %v195 = vmax.f32 %v193, %v194
    %v196 = vsel %vm90, %v73, -inf
    %v197 = vrot.slane %v196, 4
    %v198 = vmax.f32 %v196, %v197
    %v199 = vrot.slane %v198, 2
    %v200 = vmax.f32 %v198, %v199
    %v201 = vrot.slane %v200, 1
    %v202 = vmax.f32 %v200, %v201
    %203 = vst [vmem:[#allocation1] ss:$2 sm:$0xff] %v31
    %v204 = vld.sshfl [vmem:[#allocation1] sm:$0xff pattern:$0x75316420]
    %v205 = vld.sshfl [vmem:[#allocation1 + $0x8] sm:$0xff pattern:$0x75316420]
    %s206 = scalar_lea.vmem [#allocation1], 16
    %207 = vst [vmem:[%s206] ss:$2 sm:$0xff] %v32
    %v208 = vld.sshfl [vmem:[#allocation1 + $0x10] sm:$0xff pattern:$0x75316420]
    %v209 = vld.sshfl [vmem:[#allocation1 + $0x18] sm:$0xff pattern:$0x75316420]
    %s210 = scalar_lea.vmem [#allocation1], 32
    %211 = vst [vmem:[%s210] ss:$2 sm:$0xff] %v33
    %v212 = vld.sshfl [vmem:[#allocation1 + $0x20] sm:$0xff pattern:$0x75316420]
    %v213 = vld.sshfl [vmem:[#allocation1 + $0x28] sm:$0xff pattern:$0x75316420]
    %s214 = scalar_lea.vmem [#allocation1], 48
    %215 = vst [vmem:[%s214] ss:$2 sm:$0xff] %v34
    %v216 = vld.sshfl [vmem:[#allocation1 + $0x30] sm:$0xff pattern:$0x75316420]
    %v217 = vld.sshfl [vmem:[#allocation1 + $0x38] sm:$0xff pattern:$0x75316420]
    %218 = vst [vmem:[#allocation1] ss:$2 sm:$0xff] %v35
    %v219 = vld.sshfl [vmem:[#allocation1] sm:$0xff pattern:$0x75316420]
    %v220 = vld.sshfl [vmem:[#allocation1 + $0x8] sm:$0xff pattern:$0x75316420]
    %221 = vst [vmem:[%s206] ss:$2 sm:$0xff] %v36
    %v222 = vld.sshfl [vmem:[#allocation1 + $0x10] sm:$0xff pattern:$0x75316420]
    %v223 = vld.sshfl [vmem:[#allocation1 + $0x18] sm:$0xff pattern:$0x75316420]
    %224 = vst [vmem:[%s210] ss:$2 sm:$0xff] %v37
    %v225 = vld.sshfl [vmem:[#allocation1 + $0x20] sm:$0xff pattern:$0x75316420]
    %v226 = vld.sshfl [vmem:[#allocation1 + $0x28] sm:$0xff pattern:$0x75316420]
    %227 = vst [vmem:[%s214] ss:$2 sm:$0xff] %v38
    %v228 = vld.sshfl [vmem:[#allocation1 + $0x30] sm:$0xff pattern:$0x75316420]
    %v229 = vld.sshfl [vmem:[#allocation1 + $0x38] sm:$0xff pattern:$0x75316420]
    %v246 = vsel %vm90, %v204, 0.0
    %v247 = vrot.slane %v246, 4
    %v248 = vadd.f32 %v246, %v247
    %v249 = vrot.slane %v248, 2
    %v250 = vadd.f32 %v248, %v249
    %v251 = vrot.slane %v250, 1
    %v252 = vadd.f32 %v250, %v251
    %v253 = vsel %vm90, %v205, 0.0
    %v254 = vrot.slane %v253, 4
    %v255 = vadd.f32 %v253, %v254
    %v256 = vrot.slane %v255, 2
    %v257 = vadd.f32 %v255, %v256
    %v258 = vrot.slane %v257, 1
    %v259 = vadd.f32 %v257, %v258
    %v260 = vsel %vm90, %v208, 0.0
    %v261 = vrot.slane %v260, 4
    %v262 = vadd.f32 %v260, %v261
    %v263 = vrot.slane %v262, 2
    %v264 = vadd.f32 %v262, %v263
    %v265 = vrot.slane %v264, 1
    %v266 = vadd.f32 %v264, %v265
    %v267 = vsel %vm90, %v209, 0.0
    %v268 = vrot.slane %v267, 4
    %v269 = vadd.f32 %v267, %v268
    %v270 = vrot.slane %v269, 2
    %v271 = vadd.f32 %v269, %v270
    %v272 = vrot.slane %v271, 1
    %v273 = vadd.f32 %v271, %v272
    %v274 = vsel %vm90, %v212, 0.0
    %v275 = vrot.slane %v274, 4
    %v276 = vadd.f32 %v274, %v275
    %v277 = vrot.slane %v276, 2
    %v278 = vadd.f32 %v276, %v277
    %v279 = vrot.slane %v278, 1
    %v280 = vadd.f32 %v278, %v279
    %v281 = vsel %vm90, %v213, 0.0
    %v282 = vrot.slane %v281, 4
    %v283 = vadd.f32 %v281, %v282
    %v284 = vrot.slane %v283, 2
    %v285 = vadd.f32 %v283, %v284
    %v286 = vrot.slane %v285, 1
    %v287 = vadd.f32 %v285, %v286
    %v288 = vsel %vm90, %v216, 0.0
    %v289 = vrot.slane %v288, 4
    %v290 = vadd.f32 %v288, %v289
    %v291 = vrot.slane %v290, 2
    %v292 = vadd.f32 %v290, %v291
    %v293 = vrot.slane %v292, 1
    %v294 = vadd.f32 %v292, %v293
    %v295 = vsel %vm90, %v217, 0.0
    %v296 = vrot.slane %v295, 4
    %v297 = vadd.f32 %v295, %v296
    %v298 = vrot.slane %v297, 2
    %v299 = vadd.f32 %v297, %v298
    %v300 = vrot.slane %v299, 1
    %v301 = vadd.f32 %v299, %v300
    %v302 = vsel %vm90, %v219, 0.0
    %v303 = vrot.slane %v302, 4
    %v304 = vadd.f32 %v302, %v303
    %v305 = vrot.slane %v304, 2
    %v306 = vadd.f32 %v304, %v305
    %v307 = vrot.slane %v306, 1
    %v308 = vadd.f32 %v306, %v307
    %v309 = vsel %vm90, %v220, 0.0
    %v310 = vrot.slane %v309, 4
    %v311 = vadd.f32 %v309, %v310
    %v312 = vrot.slane %v311, 2
    %v313 = vadd.f32 %v311, %v312
    %v314 = vrot.slane %v313, 1
    %v315 = vadd.f32 %v313, %v314
    %v316 = vsel %vm90, %v222, 0.0
    %v317 = vrot.slane %v316, 4
    %v318 = vadd.f32 %v316, %v317
    %v319 = vrot.slane %v318, 2
    %v320 = vadd.f32 %v318, %v319
    %v321 = vrot.slane %v320, 1
    %v322 = vadd.f32 %v320, %v321
    %v323 = vsel %vm90, %v223, 0.0
    %v324 = vrot.slane %v323, 4
    %v325 = vadd.f32 %v323, %v324
    %v326 = vrot.slane %v325, 2
    %v327 = vadd.f32 %v325, %v326
    %v328 = vrot.slane %v327, 1
    %v329 = vadd.f32 %v327, %v328
    %v330 = vsel %vm90, %v225, 0.0
    %v331 = vrot.slane %v330, 4
    %v332 = vadd.f32 %v330, %v331
    %v333 = vrot.slane %v332, 2
    %v334 = vadd.f32 %v332, %v333
    %v335 = vrot.slane %v334, 1
    %v336 = vadd.f32 %v334, %v335
    %v337 = vsel %vm90, %v226, 0.0
    %v338 = vrot.slane %v337, 4
    %v339 = vadd.f32 %v337, %v338
    %v340 = vrot.slane %v339, 2
    %v341 = vadd.f32 %v339, %v340
    %v342 = vrot.slane %v341, 1
    %v343 = vadd.f32 %v341, %v342
    %v344 = vsel %vm90, %v228, 0.0
    %v345 = vrot.slane %v344, 4
    %v346 = vadd.f32 %v344, %v345
    %v347 = vrot.slane %v346, 2
    %v348 = vadd.f32 %v346, %v347
    %v349 = vrot.slane %v348, 1
    %v350 = vadd.f32 %v348, %v349
    %v351 = vsel %vm90, %v229, 0.0
    %v352 = vrot.slane %v351, 4
    %v353 = vadd.f32 %v351, %v352
    %v354 = vrot.slane %v353, 2
    %v355 = vadd.f32 %v353, %v354
    %v356 = vrot.slane %v355, 1
    %v357 = vadd.f32 %v355, %v356
    %v358 = vmul.f32 %v252, 0.25
    %v359 = vmul.f32 %v259, 0.25
    %v360 = vmul.f32 %v266, 0.25
    %v361 = vmul.f32 %v273, 0.25
    %v362 = vmul.f32 %v280, 0.25
    %v363 = vmul.f32 %v287, 0.25
    %v364 = vmul.f32 %v294, 0.25
    %v365 = vmul.f32 %v301, 0.25
    %v366 = vmul.f32 %v308, 0.25
    %v367 = vmul.f32 %v315, 0.25
    %v368 = vmul.f32 %v322, 0.25
    %v369 = vmul.f32 %v329, 0.25
    %v370 = vmul.f32 %v336, 0.25
    %v371 = vmul.f32 %v343, 0.25
    %v372 = vmul.f32 %v350, 0.25
    %v373 = vmul.f32 %v357, 0.25
    %v374 = vadd.f32 %v97, %v358
    %v375 = vadd.f32 %v104, %v359
    %v376 = vadd.f32 %v111, %v360
    %v377 = vadd.f32 %v118, %v361
    %v378 = vadd.f32 %v125, %v362
    %v379 = vadd.f32 %v132, %v363
    %v380 = vadd.f32 %v139, %v364
    %v381 = vadd.f32 %v146, %v365
    %v382 = vadd.f32 %v153, %v366
    %v383 = vadd.f32 %v160, %v367
    %v384 = vadd.f32 %v167, %v368
    %v385 = vadd.f32 %v174, %v369
    %v386 = vadd.f32 %v181, %v370
    %v387 = vadd.f32 %v188, %v371
    %v388 = vadd.f32 %v195, %v372
    %v389 = vadd.f32 %v202, %v373
    %vm406 = vcmask 1041409
    %v407 = vsel %vm406, %v376, %v374
    %vm408 = vcmask 1042434
    %v409 = vsel %vm408, %v378, %v407
    %vm410 = vcmask 1043459
    %v411 = vsel %vm410, %v380, %v409
    %vm412 = vcmask 1044484
    %v413 = vsel %vm412, %v382, %v411
    %vm414 = vcmask 1045509
    %v415 = vsel %vm414, %v384, %v413
    %vm416 = vcmask 1046534
    %v417 = vsel %vm416, %v386, %v415
    %vm418 = vcmask 1047559
    %v419 = vsel %vm418, %v388, %v417
    %v420 = vsel %vm406, %v377, %v375
    %v421 = vsel %vm408, %v379, %v420
    %v422 = vsel %vm410, %v381, %v421
    %v423 = vsel %vm412, %v383, %v422
    %v424 = vsel %vm414, %v385, %v423
    %v425 = vsel %vm416, %v387, %v424
    %v426 = vsel %vm418, %v389, %v425
    %v429 = vadd.f32 %v419, %v426
    %430 = vadd.xlane.f32.xlu0 %v429
    %v431 = vpop.xlane.xlu0 %430
    %v432 = vmul.f32 %v431, 0.00390625
    %v434 = vrot.slane %v432, 1
    %v435 = vrot.slane %v432, 2
    %v436 = vrot.slane %v432, 3
    %v437 = vrot.slane %v432, 4
    %v438 = vrot.slane %v432, 5
    %v439 = vrot.slane %v432, 6
    %v440 = vrot.slane %v432, 7
    %v449 = vsub.f32 %v374, %v432
    %v450 = vsub.f32 %v375, %v432
    %v451 = vsub.f32 %v376, %v434
    %v452 = vsub.f32 %v377, %v434
    %v453 = vsub.f32 %v378, %v435
    %v454 = vsub.f32 %v379, %v435
    %v455 = vsub.f32 %v380, %v436
    %v456 = vsub.f32 %v381, %v436
    %v457 = vsub.f32 %v382, %v437
    %v458 = vsub.f32 %v383, %v437
    %v459 = vsub.f32 %v384, %v438
    %v460 = vsub.f32 %v385, %v438
    %v461 = vsub.f32 %v386, %v439
    %v462 = vsub.f32 %v387, %v439
    %v463 = vsub.f32 %v388, %v440
    %v464 = vsub.f32 %v389, %v440
    %v465 = vmul.f32 %v449, %v449
    %v466 = vmul.f32 %v450, %v450
    %v467 = vmul.f32 %v451, %v451
    %v468 = vmul.f32 %v452, %v452
    %v469 = vmul.f32 %v453, %v453
    %v470 = vmul.f32 %v454, %v454
    %v471 = vmul.f32 %v455, %v455
    %v472 = vmul.f32 %v456, %v456
    %v473 = vmul.f32 %v457, %v457
    %v474 = vmul.f32 %v458, %v458
    %v475 = vmul.f32 %v459, %v459
    %v476 = vmul.f32 %v460, %v460
    %v477 = vmul.f32 %v461, %v461
    %v478 = vmul.f32 %v462, %v462
    %v479 = vmul.f32 %v463, %v463
    %v480 = vmul.f32 %v464, %v464
    %v497 = vrot.slane %v467, 7
    %v498 = vsel %vm406, %v497, %v465
    %v499 = vrot.slane %v469, 6
    %v500 = vsel %vm408, %v499, %v498
    %v501 = vrot.slane %v471, 5
    %v502 = vsel %vm410, %v501, %v500
    %v503 = vrot.slane %v473, 4
    %v504 = vsel %vm412, %v503, %v502
    %v505 = vrot.slane %v475, 3
    %v506 = vsel %vm414, %v505, %v504
    %v507 = vrot.slane %v477, 2
    %v508 = vsel %vm416, %v507, %v506
    %v509 = vrot.slane %v479, 1
    %v510 = vsel %vm418, %v509, %v508
    %v511 = vrot.slane %v468, 7
    %v512 = vsel %vm406, %v511, %v466
    %v513 = vrot.slane %v470, 6
    %v514 = vsel %vm408, %v513, %v512
    %v515 = vrot.slane %v472, 5
    %v516 = vsel %vm410, %v515, %v514
    %v517 = vrot.slane %v474, 4
    %v518 = vsel %vm412, %v517, %v516
    %v519 = vrot.slane %v476, 3
    %v520 = vsel %vm414, %v519, %v518
    %v521 = vrot.slane %v478, 2
    %v522 = vsel %vm416, %v521, %v520
    %v523 = vrot.slane %v480, 1
    %v524 = vsel %vm418, %v523, %v522
    %v527 = vadd.f32 %v510, %v524
    %528 = vadd.xlane.f32.xlu0 %v527
    %v529 = vpop.xlane.xlu0 %528
    %v530 = vmul.f32 %v529, 0.003921569
    %v531 = vrsqrt.pop %v530
    %v532 = vmul.f32 %v531, %v530
    %v533 = vmul.f32 %v532, %v531
    %v534 = vmul.f32 0.5, %v533
    %v535 = vsub.f32 1.5, %v534
    %v536 = vmul.f32 %v531, %v535
    %v537 = vmul.f32 %v530, %v536
    %vm538 = vcmp.eq.f32.partialorder %v530, inf
    %v539 = vsel %vm538, %v530, %v537
    %vm540 = vcmp.eq.f32.partialorder %v530, 0.0
    %v541 = vand.u32 %v530, 2147483648
    %v542 = vsel %vm540, %v541, %v539
    %v543 = vadd.f32 %v542, 1e-05
    %v544 = vrcp.pop %v543
    %v545 = vmul.f32 %v543, %v544
    %v546 = vsub.f32 2.0, %v545
    %v547 = vmul.f32 %v544, %v546
    %v549 = vrot.slane %v547, 1
    %v550 = vrot.slane %v547, 2
    %v551 = vrot.slane %v547, 3
    %v552 = vrot.slane %v547, 4
    %v553 = vrot.slane %v547, 5
    %v554 = vrot.slane %v547, 6
    %v555 = vrot.slane %v547, 7
    %v564 = vmul.f32 %v449, %v547
    %v565 = vmul.f32 %v450, %v547
    %v566 = vmul.f32 %v451, %v549
    %v567 = vmul.f32 %v452, %v549
    %v568 = vmul.f32 %v453, %v550
    %v569 = vmul.f32 %v454, %v550
    %v570 = vmul.f32 %v455, %v551
    %v571 = vmul.f32 %v456, %v551
    %v572 = vmul.f32 %v457, %v552
    %v573 = vmul.f32 %v458, %v552
    %v574 = vmul.f32 %v459, %v553
    %v575 = vmul.f32 %v460, %v553
    %v576 = vmul.f32 %v461, %v554
    %v577 = vmul.f32 %v462, %v554
    %v578 = vmul.f32 %v463, %v555
    %v579 = vmul.f32 %v464, %v555
    %v580 = vld [vmem:[%s1] sm:$0xff]
    %582 = vset.pattern.permute.xlu0 0
    %583 = vperm.xlu0 %582, %v580
    %v584 = vpop.permute.xlu0 %583
    %v585 = vrot.slane %v584, 1
    %v586 = vrot.slane %v584, 2
    %v587 = vrot.slane %v584, 3
    %v588 = vrot.slane %v584, 4
    %v589 = vrot.slane %v584, 5
    %v590 = vrot.slane %v584, 6
    %v591 = vrot.slane %v584, 7
    %v600 = vmul.f32 %v564, %v584
    %v601 = vmul.f32 %v565, %v584
    %v602 = vmul.f32 %v566, %v585
    %v603 = vmul.f32 %v567, %v585
    %v604 = vmul.f32 %v568, %v586
    %v605 = vmul.f32 %v569, %v586
    %v606 = vmul.f32 %v570, %v587
    %v607 = vmul.f32 %v571, %v587
    %v608 = vmul.f32 %v572, %v588
    %v609 = vmul.f32 %v573, %v588
    %v610 = vmul.f32 %v574, %v589
    %v611 = vmul.f32 %v575, %v589
    %v612 = vmul.f32 %v576, %v590
    %v613 = vmul.f32 %v577, %v590
    %v614 = vmul.f32 %v578, %v591
    %v615 = vmul.f32 %v579, %v591
    %v616 = vld [vmem:[%s2] sm:$0xff]
    %618 = vset.pattern.permute.xlu0 0
    %619 = vperm.xlu0 %618, %v616
    %v620 = vpop.permute.xlu0 %619
    %v621 = vrot.slane %v620, 1
    %v622 = vrot.slane %v620, 2
    %v623 = vrot.slane %v620, 3
    %v624 = vrot.slane %v620, 4
    %v625 = vrot.slane %v620, 5
    %v626 = vrot.slane %v620, 6
    %v627 = vrot.slane %v620, 7
    %v636 = vadd.f32 %v600, %v620
    %v637 = vadd.f32 %v601, %v620
    %v638 = vadd.f32 %v602, %v621
    %v639 = vadd.f32 %v603, %v621
    %v640 = vadd.f32 %v604, %v622
    %v641 = vadd.f32 %v605, %v622
    %v642 = vadd.f32 %v606, %v623
    %v643 = vadd.f32 %v607, %v623
    %v644 = vadd.f32 %v608, %v624
    %v645 = vadd.f32 %v609, %v624
    %v646 = vadd.f32 %v610, %v625
    %v647 = vadd.f32 %v611, %v625
    %v648 = vadd.f32 %v612, %v626
    %v649 = vadd.f32 %v613, %v626
    %v650 = vadd.f32 %v614, %v627
    %v651 = vadd.f32 %v615, %v627
    %v652 = vxor.u32 %v636, 2147483648
    %v653 = vxor.u32 %v637, 2147483648
    %v654 = vxor.u32 %v638, 2147483648
    %v655 = vxor.u32 %v639, 2147483648
    %v656 = vxor.u32 %v640, 2147483648
    %v657 = vxor.u32 %v641, 2147483648
    %v658 = vxor.u32 %v642, 2147483648
    %v659 = vxor.u32 %v643, 2147483648
    %v660 = vxor.u32 %v644, 2147483648
    %v661 = vxor.u32 %v645, 2147483648
    %v662 = vxor.u32 %v646, 2147483648
    %v663 = vxor.u32 %v647, 2147483648
    %v664 = vxor.u32 %v648, 2147483648
    %v665 = vxor.u32 %v649, 2147483648
    %v666 = vxor.u32 %v650, 2147483648
    %v667 = vxor.u32 %v651, 2147483648
    %v668 = vmul.f32 %v652, 1.442695
    %v669 = vpow.pop %v668
    %v670 = vmul.f32 %v653, 1.442695
    %v671 = vpow.pop %v670
    %v672 = vmul.f32 %v654, 1.442695
    %v673 = vpow.pop %v672
    %v674 = vmul.f32 %v655, 1.442695
    %v675 = vpow.pop %v674
    %v676 = vmul.f32 %v656, 1.442695
    %v677 = vpow.pop %v676
    %v678 = vmul.f32 %v657, 1.442695
    %v679 = vpow.pop %v678
    %v680 = vmul.f32 %v658, 1.442695
    %v681 = vpow.pop %v680
    %v682 = vmul.f32 %v659, 1.442695
    %v683 = vpow.pop %v682
    %v684 = vmul.f32 %v660, 1.442695
    %v685 = vpow.pop %v684
    %v686 = vmul.f32 %v661, 1.442695
    %v687 = vpow.pop %v686
    %v688 = vmul.f32 %v662, 1.442695
    %v689 = vpow.pop %v688
    %v690 = vmul.f32 %v663, 1.442695
    %v691 = vpow.pop %v690
    %v692 = vmul.f32 %v664, 1.442695
    %v693 = vpow.pop %v692
    %v694 = vmul.f32 %v665, 1.442695
    %v695 = vpow.pop %v694
    %v696 = vmul.f32 %v666, 1.442695
    %v697 = vpow.pop %v696
    %v698 = vmul.f32 %v667, 1.442695
    %v699 = vpow.pop %v698
    %v700 = vadd.f32 %v669, 1.0
    %v701 = vadd.f32 %v671, 1.0
    %v702 = vadd.f32 %v673, 1.0
    %v703 = vadd.f32 %v675, 1.0
    %v704 = vadd.f32 %v677, 1.0
    %v705 = vadd.f32 %v679, 1.0
    %v706 = vadd.f32 %v681, 1.0
    %v707 = vadd.f32 %v683, 1.0
    %v708 = vadd.f32 %v685, 1.0
    %v709 = vadd.f32 %v687, 1.0
    %v710 = vadd.f32 %v689, 1.0
    %v711 = vadd.f32 %v691, 1.0
    %v712 = vadd.f32 %v693, 1.0
    %v713 = vadd.f32 %v695, 1.0
    %v714 = vadd.f32 %v697, 1.0
    %v715 = vadd.f32 %v699, 1.0
    %v716 = vrcp.pop %v700
    %v717 = vmul.f32 %v700, %v716
    %v718 = vsub.f32 1.0, %v717
    %v719 = vmul.f32 %v716, %v718
    %v720 = vadd.f32 %v716, %v719
    %vm721 = vweird.f32 %v700
    %vm722 = vweird.f32 %v716
    %vm723 = vmor %vm721, %vm722
    %v724 = vsel %vm723, %v716, %v720
    %v725 = vand.u32 2147483647, %v700
    %vm726 = vcmp.eq.f32.partialorder %v725, 8.507059e+37
    %v727 = vand.u32 %v700, 2147483648
    %v728 = vor.u32 1.1754944e-38, %v727
    %v729 = vsel %vm726, %v728, %v724
    %v730 = vmul.f32 1.0, %v729
    %v731 = vrcp.pop %v701
    %v732 = vmul.f32 %v701, %v731
    %v733 = vsub.f32 1.0, %v732
    %v734 = vmul.f32 %v731, %v733
    %v735 = vadd.f32 %v731, %v734
    %vm736 = vweird.f32 %v701
    %vm737 = vweird.f32 %v731
    %vm738 = vmor %vm736, %vm737
    %v739 = vsel %vm738, %v731, %v735
    %v740 = vand.u32 2147483647, %v701
    %vm741 = vcmp.eq.f32.partialorder %v740, 8.507059e+37
    %v742 = vand.u32 %v701, 2147483648
    %v743 = vor.u32 1.1754944e-38, %v742
    %v744 = vsel %vm741, %v743, %v739
    %v745 = vmul.f32 1.0, %v744
    %v746 = vrcp.pop %v702
    %v747 = vmul.f32 %v702, %v746
    %v748 = vsub.f32 1.0, %v747
    %v749 = vmul.f32 %v746, %v748
    %v750 = vadd.f32 %v746, %v749
    %vm751 = vweird.f32 %v702
    %vm752 = vweird.f32 %v746
    %vm753 = vmor %vm751, %vm752
    %v754 = vsel %vm753, %v746, %v750
    %v755 = vand.u32 2147483647, %v702
    %vm756 = vcmp.eq.f32.partialorder %v755, 8.507059e+37
    %v757 = vand.u32 %v702, 2147483648
    %v758 = vor.u32 1.1754944e-38, %v757
    %v759 = vsel %vm756, %v758, %v754
    %v760 = vmul.f32 1.0, %v759
    %v761 = vrcp.pop %v703
    %v762 = vmul.f32 %v703, %v761
    %v763 = vsub.f32 1.0, %v762
    %v764 = vmul.f32 %v761, %v763
    %v765 = vadd.f32 %v761, %v764
    %vm766 = vweird.f32 %v703
    %vm767 = vweird.f32 %v761
    %vm768 = vmor %vm766, %vm767
    %v769 = vsel %vm768, %v761, %v765
    %v770 = vand.u32 2147483647, %v703
    %vm771 = vcmp.eq.f32.partialorder %v770, 8.507059e+37
    %v772 = vand.u32 %v703, 2147483648
    %v773 = vor.u32 1.1754944e-38, %v772
    %v774 = vsel %vm771, %v773, %v769
    %v775 = vmul.f32 1.0, %v774
    %v776 = vrcp.pop %v704
    %v777 = vmul.f32 %v704, %v776
    %v778 = vsub.f32 1.0, %v777
    %v779 = vmul.f32 %v776, %v778
    %v780 = vadd.f32 %v776, %v779
    %vm781 = vweird.f32 %v704
    %vm782 = vweird.f32 %v776
    %vm783 = vmor %vm781, %vm782
    %v784 = vsel %vm783, %v776, %v780
    %v785 = vand.u32 2147483647, %v704
    %vm786 = vcmp.eq.f32.partialorder %v785, 8.507059e+37
    %v787 = vand.u32 %v704, 2147483648
    %v788 = vor.u32 1.1754944e-38, %v787
    %v789 = vsel %vm786, %v788, %v784
    %v790 = vmul.f32 1.0, %v789
    %v791 = vrcp.pop %v705
    %v792 = vmul.f32 %v705, %v791
    %v793 = vsub.f32 1.0, %v792
    %v794 = vmul.f32 %v791, %v793
    %v795 = vadd.f32 %v791, %v794
    %vm796 = vweird.f32 %v705
    %vm797 = vweird.f32 %v791
    %vm798 = vmor %vm796, %vm797
    %v799 = vsel %vm798, %v791, %v795
    %v800 = vand.u32 2147483647, %v705
    %vm801 = vcmp.eq.f32.partialorder %v800, 8.507059e+37
    %v802 = vand.u32 %v705, 2147483648
    %v803 = vor.u32 1.1754944e-38, %v802
    %v804 = vsel %vm801, %v803, %v799
    %v805 = vmul.f32 1.0, %v804
    %v806 = vrcp.pop %v706
    %v807 = vmul.f32 %v706, %v806
    %v808 = vsub.f32 1.0, %v807
    %v809 = vmul.f32 %v806, %v808
    %v810 = vadd.f32 %v806, %v809
    %vm811 = vweird.f32 %v706
    %vm812 = vweird.f32 %v806
    %vm813 = vmor %vm811, %vm812
    %v814 = vsel %vm813, %v806, %v810
    %v815 = vand.u32 2147483647, %v706
    %vm816 = vcmp.eq.f32.partialorder %v815, 8.507059e+37
    %v817 = vand.u32 %v706, 2147483648
    %v818 = vor.u32 1.1754944e-38, %v817
    %v819 = vsel %vm816, %v818, %v814
    %v820 = vmul.f32 1.0, %v819
    %v821 = vrcp.pop %v707
    %v822 = vmul.f32 %v707, %v821
    %v823 = vsub.f32 1.0, %v822
    %v824 = vmul.f32 %v821, %v823
    %v825 = vadd.f32 %v821, %v824
    %vm826 = vweird.f32 %v707
    %vm827 = vweird.f32 %v821
    %vm828 = vmor %vm826, %vm827
    %v829 = vsel %vm828, %v821, %v825
    %v830 = vand.u32 2147483647, %v707
    %vm831 = vcmp.eq.f32.partialorder %v830, 8.507059e+37
    %v832 = vand.u32 %v707, 2147483648
    %v833 = vor.u32 1.1754944e-38, %v832
    %v834 = vsel %vm831, %v833, %v829
    %v835 = vmul.f32 1.0, %v834
    %v836 = vrcp.pop %v708
    %v837 = vmul.f32 %v708, %v836
    %v838 = vsub.f32 1.0, %v837
    %v839 = vmul.f32 %v836, %v838
    %v840 = vadd.f32 %v836, %v839
    %vm841 = vweird.f32 %v708
    %vm842 = vweird.f32 %v836
    %vm843 = vmor %vm841, %vm842
    %v844 = vsel %vm843, %v836, %v840
    %v845 = vand.u32 2147483647, %v708
    %vm846 = vcmp.eq.f32.partialorder %v845, 8.507059e+37
    %v847 = vand.u32 %v708, 2147483648
    %v848 = vor.u32 1.1754944e-38, %v847
    %v849 = vsel %vm846, %v848, %v844
    %v850 = vmul.f32 1.0, %v849
    %v851 = vrcp.pop %v709
    %v852 = vmul.f32 %v709, %v851
    %v853 = vsub.f32 1.0, %v852
    %v854 = vmul.f32 %v851, %v853
    %v855 = vadd.f32 %v851, %v854
    %vm856 = vweird.f32 %v709
    %vm857 = vweird.f32 %v851
    %vm858 = vmor %vm856, %vm857
    %v859 = vsel %vm858, %v851, %v855
    %v860 = vand.u32 2147483647, %v709
    %vm861 = vcmp.eq.f32.partialorder %v860, 8.507059e+37
    %v862 = vand.u32 %v709, 2147483648
    %v863 = vor.u32 1.1754944e-38, %v862
    %v864 = vsel %vm861, %v863, %v859
    %v865 = vmul.f32 1.0, %v864
    %v866 = vrcp.pop %v710
    %v867 = vmul.f32 %v710, %v866
    %v868 = vsub.f32 1.0, %v867
    %v869 = vmul.f32 %v866, %v868
    %v870 = vadd.f32 %v866, %v869
    %vm871 = vweird.f32 %v710
    %vm872 = vweird.f32 %v866
    %vm873 = vmor %vm871, %vm872
    %v874 = vsel %vm873, %v866, %v870
    %v875 = vand.u32 2147483647, %v710
    %vm876 = vcmp.eq.f32.partialorder %v875, 8.507059e+37
    %v877 = vand.u32 %v710, 2147483648
    %v878 = vor.u32 1.1754944e-38, %v877
    %v879 = vsel %vm876, %v878, %v874
    %v880 = vmul.f32 1.0, %v879
    %v881 = vrcp.pop %v711
    %v882 = vmul.f32 %v711, %v881
    %v883 = vsub.f32 1.0, %v882
    %v884 = vmul.f32 %v881, %v883
    %v885 = vadd.f32 %v881, %v884
    %vm886 = vweird.f32 %v711
    %vm887 = vweird.f32 %v881
    %vm888 = vmor %vm886, %vm887
    %v889 = vsel %vm888, %v881, %v885
    %v890 = vand.u32 2147483647, %v711
    %vm891 = vcmp.eq.f32.partialorder %v890, 8.507059e+37
    %v892 = vand.u32 %v711, 2147483648
    %v893 = vor.u32 1.1754944e-38, %v892
    %v894 = vsel %vm891, %v893, %v889
    %v895 = vmul.f32 1.0, %v894
    %v896 = vrcp.pop %v712
    %v897 = vmul.f32 %v712, %v896
    %v898 = vsub.f32 1.0, %v897
    %v899 = vmul.f32 %v896, %v898
    %v900 = vadd.f32 %v896, %v899
    %vm901 = vweird.f32 %v712
    %vm902 = vweird.f32 %v896
    %vm903 = vmor %vm901, %vm902
    %v904 = vsel %vm903, %v896, %v900
    %v905 = vand.u32 2147483647, %v712
    %vm906 = vcmp.eq.f32.partialorder %v905, 8.507059e+37
    %v907 = vand.u32 %v712, 2147483648
    %v908 = vor.u32 1.1754944e-38, %v907
    %v909 = vsel %vm906, %v908, %v904
    %v910 = vmul.f32 1.0, %v909
    %v911 = vrcp.pop %v713
    %v912 = vmul.f32 %v713, %v911
    %v913 = vsub.f32 1.0, %v912
    %v914 = vmul.f32 %v911, %v913
    %v915 = vadd.f32 %v911, %v914
    %vm916 = vweird.f32 %v713
    %vm917 = vweird.f32 %v911
    %vm918 = vmor %vm916, %vm917
    %v919 = vsel %vm918, %v911, %v915
    %v920 = vand.u32 2147483647, %v713
    %vm921 = vcmp.eq.f32.partialorder %v920, 8.507059e+37
    %v922 = vand.u32 %v713, 2147483648
    %v923 = vor.u32 1.1754944e-38, %v922
    %v924 = vsel %vm921, %v923, %v919
    %v925 = vmul.f32 1.0, %v924
    %v926 = vrcp.pop %v714
    %v927 = vmul.f32 %v714, %v926
    %v928 = vsub.f32 1.0, %v927
    %v929 = vmul.f32 %v926, %v928
    %v930 = vadd.f32 %v926, %v929
    %vm931 = vweird.f32 %v714
    %vm932 = vweird.f32 %v926
    %vm933 = vmor %vm931, %vm932
    %v934 = vsel %vm933, %v926, %v930
    %v935 = vand.u32 2147483647, %v714
    %vm936 = vcmp.eq.f32.partialorder %v935, 8.507059e+37
    %v937 = vand.u32 %v714, 2147483648
    %v938 = vor.u32 1.1754944e-38, %v937
    %v939 = vsel %vm936, %v938, %v934
    %v940 = vmul.f32 1.0, %v939
    %v941 = vrcp.pop %v715
    %v942 = vmul.f32 %v715, %v941
    %v943 = vsub.f32 1.0, %v942
    %v944 = vmul.f32 %v941, %v943
    %v945 = vadd.f32 %v941, %v944
    %vm946 = vweird.f32 %v715
    %vm947 = vweird.f32 %v941
    %vm948 = vmor %vm946, %vm947
    %v949 = vsel %vm948, %v941, %v945
    %v950 = vand.u32 2147483647, %v715
    %vm951 = vcmp.eq.f32.partialorder %v950, 8.507059e+37
    %v952 = vand.u32 %v715, 2147483648
    %v953 = vor.u32 1.1754944e-38, %v952
    %v954 = vsel %vm951, %v953, %v949
    %v955 = vmul.f32 1.0, %v954
    %v956 = vperm.slane %v730, 0
    %v957 = vperm.slane %v745, 0
    %v958 = vperm.slane %v760, 0
    %v959 = vperm.slane %v775, 0
    %v960 = vperm.slane %v790, 0
    %v961 = vperm.slane %v805, 0
    %v962 = vperm.slane %v820, 0
    %v963 = vperm.slane %v835, 0
    %v964 = vperm.slane %v850, 0
    %v965 = vperm.slane %v865, 0
    %v966 = vperm.slane %v880, 0
    %v967 = vperm.slane %v895, 0
    %v968 = vperm.slane %v910, 0
    %v969 = vperm.slane %v925, 0
    %v970 = vperm.slane %v940, 0
    %v971 = vperm.slane %v955, 0
    %v988 = vrot.slane %v957, 4
    %v989 = vrot.slane %v959, 4
    %v990 = vrot.slane %v961, 4
    %v991 = vrot.slane %v963, 4
    %v992 = vrot.slane %v965, 4
    %v993 = vrot.slane %v967, 4
    %v994 = vrot.slane %v969, 4
    %v995 = vrot.slane %v971, 4
    %v996 = vsel %vm90, %v956, %v988
    %v997 = vsel %vm90, %v958, %v989
    %v998 = vsel %vm90, %v960, %v990
    %v999 = vsel %vm90, %v962, %v991
    %v1000 = vsel %vm90, %v964, %v992
    %v1001 = vsel %vm90, %v966, %v993
    %v1002 = vsel %vm90, %v968, %v994
    %v1003 = vsel %vm90, %v970, %v995
    %v1012 = vmul.f32 %v31, %v996
    %v1013 = vmul.f32 %v32, %v997
    %v1014 = vmul.f32 %v33, %v998
    %v1015 = vmul.f32 %v34, %v999
    %v1016 = vmul.f32 %v35, %v1000
    %v1017 = vmul.f32 %v36, %v1001
    %v1018 = vmul.f32 %v37, %v1002
    %v1019 = vmul.f32 %v38, %v1003
    %1020 = vst [vmem:[#allocation5] sm:$0xff] %v1012
    %1021 = vst [vmem:[#allocation5 + $0x8] sm:$0xff] %v1013
    %1022 = vst [vmem:[#allocation5 + $0x10] sm:$0xff] %v1014
    %1023 = vst [vmem:[#allocation5 + $0x18] sm:$0xff] %v1015
    %1024 = vst [vmem:[#allocation5 + $0x20] sm:$0xff] %v1016
    %1025 = vst [vmem:[#allocation5 + $0x28] sm:$0xff] %v1017
    %1026 = vst [vmem:[#allocation5 + $0x30] sm:$0xff] %v1018
    %1027 = vst [vmem:[#allocation5 + $0x38] sm:$0xff] %v1019
    // Predicated region
    $region18: #{tpu_custom_call.1} parent=1 // pred_check
      _
    $region19: #{tpu_custom_call.1} parent=1 // pred_check_branch
      %1029 = sbr.rel (0) target = $region21
    $region20: #{tpu_custom_call.1} parent=1 // pred_region
      %1031 = vsyncadd [#allocation4], 0
      %s1032 = sshll.u32 [#allocation5], 4
      %s1033 = int_to_ptr.vmem [resolvable:$true] %s1032
      %s1034 = sshll.u32 %s3, 4
      %s1035 = int_to_ptr.hbm [resolvable:$true] %s1034
      %1040 = dma.vmem_to_hbm [thread:$0]  %s1033, 1024, %s1035, [#allocation4], 128, 128, 8
    $region21: #{tpu_custom_call.1} parent=1 // pred_fallthru
      _
    // Predicated region
    $region22: #{tpu_custom_call.1} parent=1 // pred_check
      _
    $region23: #{tpu_custom_call.1} parent=1 // pred_check_branch
      %1042 = sbr.rel (0) target = $region25
    $region24: #{tpu_custom_call.1} parent=1 // pred_region
      %1044 = dma.done [#allocation4], 1024
    $region25: #{tpu_custom_call.1} parent=1 // pred_fallthru
      _
    %1045 = vsyncpa [#allocation3], 1
    %1046 = vsyncpa [#allocation4], 1

</llo_original>
